<compile_context>
chip_gen: v7x
topology: tpu7x:2x2x1
jax: 0.10.0
libtpu: 0.0.40
codegen_flags: <defaults>
</compile_context>

<pallas_src>
import jax
import jax.numpy as jnp
from jax.experimental import pallas as pl
from jax.experimental.pallas import tpu as pltpu


# ---------------------------------------------------------------------------
# Kernel
# ---------------------------------------------------------------------------
def abd_kernel(x_ref, w1_ref, b1_ref, w2_ref, b2_ref, o_ref):
    """Channels-in-sublanes / pixels-in-lanes layout.

      x_ref:  (NB, Cin, T)  pixel tile of the NCHW input (spatial flattened)
      w1_ref: (Cout, Cin)   reduction conv weight, BN1 scale folded in
      b1_ref: (Cout, 1)     folded BN1 shift (f32)
      w2_ref: (Cin, Cout)   sum_conv weight, BN2 scale folded in
      b2_ref: (Cin, 1)      conv bias * BN2 scale + BN2 shift (f32)
      o_ref:  (NB, Cin, T)

    NB is either 1 (batch in the grid) or N (batch folded into the block for
    small problems); the loop below is a small static unroll.
    """
    nb = x_ref.shape[0]
    w1 = w1_ref[...]
    w2 = w2_ref[...]
    b1 = b1_ref[...]
    b2 = b2_ref[...]
    for i in range(nb):                                                  # static unroll
        x = x_ref[i]                                                     # (Cin, T)
        # reduction: 1x1 conv (BN1 folded) + ReLU; f32 MXU accumulation
        h = jnp.dot(w1, x, preferred_element_type=jnp.float32)          # (Cout, T)
        h = jnp.maximum(h + b1, 0.0)
        # identity attention ('before_module', no head) -> sum(to_sum) == h
        # sum_conv (Dropout2d == id in eval): 1x1 conv + bias, BN2 folded
        y = jnp.dot(w2, h.astype(w2.dtype),
                    preferred_element_type=jnp.float32)                  # (Cin, T)
        y = y + b2
        # residual + sum_relu; lane-dense store (last dim = T, multiple of 128 or full HW)
        o_ref[i] = jnp.maximum(y + x.astype(jnp.float32), 0.0).astype(o_ref.dtype)


# ---------------------------------------------------------------------------
# Parameter folding (BN affine with arbitrary running stats -> conv weights)
# ---------------------------------------------------------------------------
def fold_params(raw, *, eps=1e-5, compute_dtype=jnp.bfloat16):
    """Fold BN affine into conv weights/biases. Fold math in f32, cast last."""
    s1 = raw["bn1_w"] / jnp.sqrt(raw["bn1_var"] + eps)
    s2 = raw["bn2_w"] / jnp.sqrt(raw["bn2_var"] + eps)
    w1f = (raw["w1"] * s1[:, None]).astype(compute_dtype)                # (Cout, Cin)
    b1f = (raw["bn1_b"] - raw["bn1_mean"] * s1)[:, None].astype(jnp.float32)
    w2f = (raw["w2"] * s2[:, None]).astype(compute_dtype)                # (Cin, Cout)
    b2f = (raw["conv2_b"] * s2 + raw["bn2_b"]
           - raw["bn2_mean"] * s2)[:, None].astype(jnp.float32)
    return w1f, b1f, w2f, b2f


def _spec(shape, index_map, single_buffer):
    """BlockSpec; invariant operands are single-buffered when supported."""
    if single_buffer:
        try:
            return pl.BlockSpec(shape, index_map, pipeline_mode=pl.Buffered(1))
        except TypeError:            # older jax without pipeline_mode kwarg
            pass
    return pl.BlockSpec(shape, index_map)


# ---------------------------------------------------------------------------
# Wrapper
# ---------------------------------------------------------------------------
def abd_forward(x_nchw, raw_params, *, compute_dtype=jnp.bfloat16, tile_hw=None,
                vmem_budget_bytes=None):
    N, Cin, H, W = x_nchw.shape
    Cout = raw_params["w1"].shape[0]
    HW = H * W
    itemsize = jnp.dtype(compute_dtype).itemsize

    w1f, b1f, w2f, b2f = fold_params(raw_params, compute_dtype=compute_dtype)

    # NCHW stays NCHW; only the two trailing spatial dims are merged (free reshape).
    x3 = x_nchw.reshape(N, Cin, HW).astype(compute_dtype)

    # ---- generation-aware VMEM budget ----------------------------------------
    try:
        info = pltpu.get_tpu_info()
        vmem_cap = int(getattr(info, "vmem_capacity_bytes", 64 << 20))
    except Exception:
        vmem_cap = 64 << 20                       # conservative (v7x per-TC)
    if vmem_budget_bytes is None:
        vmem_budget_bytes = int(0.70 * vmem_cap)  # leave headroom for compiler scratch
    vmem_limit_bytes = int(min(0.90 * vmem_cap, 128 << 20))

    # Weights/biases are single-buffered (constant index_map -> DMA'd once).
    weight_bytes = (w1f.size + w2f.size) * itemsize + (b1f.size + b2f.size) * 4

    def live_bytes(nb, t):
        io = 4 * nb * Cin * t * itemsize              # x + out, double-buffered
        tmp = nb * t * 4 * (Cout + 2 * Cin)           # f32 h, y, residual temporaries
        return io + tmp + weight_bytes

    # ---- tile_hw: largest multiple-of-128 divisor of HW that fits the budget --
    if tile_hw is None:
        cands = sorted((t for t in range(128, min(HW, 4096) + 1, 128) if HW % t == 0),
                       reverse=True)
        tile_hw = next((t for t in cands if live_bytes(1, t) <= vmem_budget_bytes), None)
        if tile_hw is None:
            # either HW < 128 / has no 128-multiple divisor (use full extent, allowed
            # since the block dim equals the array dim) or nothing fits (smallest tile).
            tile_hw = cands[-1] if cands else HW
    assert HW % tile_hw == 0, "tile_hw must divide HW (no pad/slice tail path)"
    num_t = HW // tile_hw

    # ---- fold batch into the block for small problems (amortize grid-step cost) --
    nb = 1
    if (N <= 8
            and N * Cin * tile_hw * itemsize <= (4 << 20)
            and live_bytes(N, tile_hw) <= vmem_budget_bytes):
        nb = N

    if nb == N:
        grid = (num_t,)
        data_spec = pl.BlockSpec((N, Cin, tile_hw), lambda t: (0, 0, t))
        wmap = lambda t: (0, 0)
        dims = ("parallel",)
    else:
        grid = (N, num_t)
        data_spec = pl.BlockSpec((1, Cin, tile_hw), lambda n, t: (n, 0, t))
        wmap = lambda n, t: (0, 0)
        dims = ("parallel", "parallel")   # megacore-shardable on v7x

    cost = pl.CostEstimate(
        flops=int(4 * N * HW * Cin * Cout),                 # two 1x1-conv matmuls
        transcendentals=0,
        bytes_accessed=int(2 * N * HW * Cin * itemsize      # read x + write out
                           + weight_bytes),
    )

    out3 = pl.pallas_call(
        abd_kernel,
        out_shape=jax.ShapeDtypeStruct((N, Cin, HW), compute_dtype),
        grid_spec=pltpu.PrefetchScalarGridSpec(
            num_scalar_prefetch=0,
            grid=grid,
            in_specs=[
                data_spec,                                              # x tile
                _spec((Cout, Cin), wmap, single_buffer=True),           # w1 (BN1 folded)
                _spec((Cout, 1), wmap, single_buffer=True),             # b1
                _spec((Cin, Cout), wmap, single_buffer=True),           # w2 (BN2 folded)
                _spec((Cin, 1), wmap, single_buffer=True),              # b2
            ],
            out_specs=data_spec,
        ),
        compiler_params=pltpu.CompilerParams(
            dimension_semantics=dims,
            vmem_limit_bytes=vmem_limit_bytes,
        ),
        cost_estimate=cost,
    )(x3, w1f, b1f, w2f, b2f)

    return out3.reshape(N, Cin, H, W)


# ---------------------------------------------------------------------------
# Raw params mirroring init_params() and a plain-JAX reference
# ---------------------------------------------------------------------------
def make_params(key, input_dim, output_dim):
    """Conv2d: kaiming_normal(fan_out, relu), bias=0.
       BatchNorm2d: weight ~ N(1, 0.02), bias=0, running_mean=0, running_var=1."""
    k1, k2, k3, k4 = jax.random.split(key, 4)
    std1 = (2.0 / output_dim) ** 0.5     # 1x1 conv fan_out = out_channels
    std2 = (2.0 / input_dim) ** 0.5
    return dict(
        w1=jax.random.normal(k1, (output_dim, input_dim), jnp.float32) * std1,
        bn1_w=1.0 + 0.02 * jax.random.normal(k2, (output_dim,), jnp.float32),
        bn1_b=jnp.zeros((output_dim,), jnp.float32),
        bn1_mean=jnp.zeros((output_dim,), jnp.float32),
        bn1_var=jnp.ones((output_dim,), jnp.float32),
        w2=jax.random.normal(k3, (input_dim, output_dim), jnp.float32) * std2,
        conv2_b=jnp.zeros((input_dim,), jnp.float32),
        bn2_w=1.0 + 0.02 * jax.random.normal(k4, (input_dim,), jnp.float32),
        bn2_b=jnp.zeros((input_dim,), jnp.float32),
        bn2_mean=jnp.zeros((input_dim,), jnp.float32),
        bn2_var=jnp.ones((input_dim,), jnp.float32),
    )


def abd_forward_ref(x_nchw, raw, eps=1e-5):
    """Plain-JAX f32 reference of the same forward (un-folded BN, eval mode)."""
    N, Cin, H, W = x_nchw.shape
    x = x_nchw.reshape(N, Cin, H * W).astype(jnp.float32)
    s1 = raw["bn1_w"] / jnp.sqrt(raw["bn1_var"] + eps)
    sh1 = raw["bn1_b"] - raw["bn1_mean"] * s1
    h = jnp.einsum("oc,ncp->nop", raw["w1"], x)
    h = jnp.maximum(h * s1[None, :, None] + sh1[None, :, None], 0.0)
    s2 = raw["bn2_w"] / jnp.sqrt(raw["bn2_var"] + eps)
    sh2 = raw["bn2_b"] - raw["bn2_mean"] * s2
    y = jnp.einsum("co,nop->ncp", raw["w2"], h) + raw["conv2_b"][None, :, None]
    y = y * s2[None, :, None] + sh2[None, :, None]
    y = jnp.maximum(y + x, 0.0)
    return y.reshape(N, Cin, H, W)


if __name__ == "__main__":
    key = jax.random.PRNGKey(0)
    kx, kp = jax.random.split(key)

    N, Cin, H, W = 2, 32, 16, 16       # input_dim = 32
    Cout = 16                           # args.abd_dim = 16

    x = jax.random.normal(kx, (N, Cin, H, W), jnp.float32)
    raw = make_params(kp, Cin, Cout)

    y_ref = abd_forward_ref(x, raw)

    # f32 path: strict check against the reference.
    y32 = jax.block_until_ready(abd_forward(x, raw, compute_dtype=jnp.float32))
    assert y32.shape == (N, Cin, H, W)
    assert jnp.allclose(y32, y_ref, atol=1e-4, rtol=1e-4), "f32 mismatch vs reference"

    # Default bf16 path (bf16-native MXU on v6e/v7x, half the HBM bytes everywhere);
    # looser tolerance vs the f32 reference.
    y16 = jax.block_until_ready(abd_forward(x, raw))
    assert y16.shape == (N, Cin, H, W)
    assert jnp.allclose(y16.astype(jnp.float32), y_ref, atol=1.5e-1, rtol=5e-2), \
        "bf16 mismatch vs reference"

    print("KERNEL_OK")
</pallas_src>

<mosaic_0001>
module attributes {stable_mosaic.version = 11 : i64} {
  func.func @abd_kernel(%arg0: i32, %arg1: memref<2x32x256xf32, #tpu.memory_space<vmem>>, %arg2: memref<16x32xf32, #tpu.memory_space<vmem>>, %arg3: memref<16x1xf32, #tpu.memory_space<vmem>>, %arg4: memref<32x16xf32, #tpu.memory_space<vmem>>, %arg5: memref<32x1xf32, #tpu.memory_space<vmem>>, %arg6: memref<2x32x256xf32, #tpu.memory_space<vmem>>) attributes {dimension_semantics = [#tpu.dimension_semantics<parallel>], iteration_bounds = array<i64: 1>, scalar_prefetch = 0 : i64, scratch_operands = 0 : i64, tpu.core_type = #tpu.core_type<tc>, window_params = [{transform_indices = @transform_0, window_bounds = array<i64: 2, 32, 256>}, {pipeline_mode = #tpu.pipeline_mode<synchronous>, transform_indices = @transform_1, window_bounds = array<i64: 16, 32>}, {pipeline_mode = #tpu.pipeline_mode<synchronous>, transform_indices = @transform_2, window_bounds = array<i64: 16, 1>}, {pipeline_mode = #tpu.pipeline_mode<synchronous>, transform_indices = @transform_3, window_bounds = array<i64: 32, 16>}, {pipeline_mode = #tpu.pipeline_mode<synchronous>, transform_indices = @transform_4, window_bounds = array<i64: 32, 1>}, {transform_indices = @transform_5, window_bounds = array<i64: 2, 32, 256>}]} {
    %c0 = arith.constant 0 : index
    %c0_0 = arith.constant 0 : index
    %0 = vector.load %arg2[%c0, %c0_0] : memref<16x32xf32, #tpu.memory_space<vmem>>, vector<16x32xf32>
    %c0_1 = arith.constant 0 : index
    %c0_2 = arith.constant 0 : index
    %1 = vector.load %arg4[%c0_1, %c0_2] : memref<32x16xf32, #tpu.memory_space<vmem>>, vector<32x16xf32>
    %c0_3 = arith.constant 0 : index
    %c0_4 = arith.constant 0 : index
    %2 = vector.load %arg3[%c0_3, %c0_4] : memref<16x1xf32, #tpu.memory_space<vmem>>, vector<16x1xf32>
    %c0_5 = arith.constant 0 : index
    %c0_6 = arith.constant 0 : index
    %3 = vector.load %arg5[%c0_5, %c0_6] : memref<32x1xf32, #tpu.memory_space<vmem>>, vector<32x1xf32>
    %c0_7 = arith.constant 0 : index
    %c0_8 = arith.constant 0 : index
    %c0_9 = arith.constant 0 : index
    %4 = vector.load %arg1[%c0_7, %c0_8, %c0_9] : memref<2x32x256xf32, #tpu.memory_space<vmem>>, vector<1x32x256xf32>
    %5 = vector.shape_cast %4 : vector<1x32x256xf32> to vector<32x256xf32>
    %cst = arith.constant dense<0.000000e+00> : vector<16x256xf32>
    %6 = tpu.matmul %0, %5, %cst {dimension_numbers = #tpu.dot_dimension_numbers<[1], [0], [0], [1], [0, 0, 1, 1], [], []>} : vector<16x32xf32>, vector<32x256xf32>, vector<16x256xf32> -> vector<16x256xf32>
    %7 = vector.broadcast %2 : vector<16x1xf32> to vector<16x256xf32>
    %8 = arith.addf %6, %7 : vector<16x256xf32>
    %cst_10 = arith.constant 0.000000e+00 : f32
    %9 = vector.broadcast %cst_10 : f32 to vector<16x256xf32>
    %10 = arith.maximumf %8, %9 : vector<16x256xf32>
    %cst_11 = arith.constant dense<0.000000e+00> : vector<32x256xf32>
    %11 = tpu.matmul %1, %10, %cst_11 {dimension_numbers = #tpu.dot_dimension_numbers<[1], [0], [0], [1], [0, 0, 1, 1], [], []>} : vector<32x16xf32>, vector<16x256xf32>, vector<32x256xf32> -> vector<32x256xf32>
    %12 = vector.broadcast %3 : vector<32x1xf32> to vector<32x256xf32>
    %13 = arith.addf %11, %12 : vector<32x256xf32>
    %14 = arith.addf %13, %5 : vector<32x256xf32>
    %cst_12 = arith.constant 0.000000e+00 : f32
    %15 = vector.broadcast %cst_12 : f32 to vector<32x256xf32>
    %16 = arith.maximumf %14, %15 : vector<32x256xf32>
    %c0_13 = arith.constant 0 : index
    %c0_14 = arith.constant 0 : index
    %c0_15 = arith.constant 0 : index
    %17 = vector.load %arg6[%c0_13, %c0_14, %c0_15] : memref<2x32x256xf32, #tpu.memory_space<vmem>>, vector<1x32x256xf32>
    %18 = vector.shape_cast %17 : vector<1x32x256xf32> to vector<32x256xf32>
    %19 = vector.shape_cast %16 : vector<32x256xf32> to vector<1x32x256xf32>
    tpu.vector_store %arg6[%c0_13, %c0_14, %c0_15], %19 {strides = array<i32>} : memref<2x32x256xf32, #tpu.memory_space<vmem>>, vector<1x32x256xf32>,
    %c1 = arith.constant 1 : index
    %c0_16 = arith.constant 0 : index
    %c0_17 = arith.constant 0 : index
    %20 = vector.load %arg1[%c1, %c0_16, %c0_17] : memref<2x32x256xf32, #tpu.memory_space<vmem>>, vector<1x32x256xf32>
    %21 = vector.shape_cast %20 : vector<1x32x256xf32> to vector<32x256xf32>
    %cst_18 = arith.constant dense<0.000000e+00> : vector<16x256xf32>
    %22 = tpu.matmul %0, %21, %cst_18 {dimension_numbers = #tpu.dot_dimension_numbers<[1], [0], [0], [1], [0, 0, 1, 1], [], []>} : vector<16x32xf32>, vector<32x256xf32>, vector<16x256xf32> -> vector<16x256xf32>
    %23 = vector.broadcast %2 : vector<16x1xf32> to vector<16x256xf32>
    %24 = arith.addf %22, %23 : vector<16x256xf32>
    %cst_19 = arith.constant 0.000000e+00 : f32
    %25 = vector.broadcast %cst_19 : f32 to vector<16x256xf32>
    %26 = arith.maximumf %24, %25 : vector<16x256xf32>
    %cst_20 = arith.constant dense<0.000000e+00> : vector<32x256xf32>
    %27 = tpu.matmul %1, %26, %cst_20 {dimension_numbers = #tpu.dot_dimension_numbers<[1], [0], [0], [1], [0, 0, 1, 1], [], []>} : vector<32x16xf32>, vector<16x256xf32>, vector<32x256xf32> -> vector<32x256xf32>
    %28 = vector.broadcast %3 : vector<32x1xf32> to vector<32x256xf32>
    %29 = arith.addf %27, %28 : vector<32x256xf32>
    %30 = arith.addf %29, %21 : vector<32x256xf32>
    %cst_21 = arith.constant 0.000000e+00 : f32
    %31 = vector.broadcast %cst_21 : f32 to vector<32x256xf32>
    %32 = arith.maximumf %30, %31 : vector<32x256xf32>
    %c1_22 = arith.constant 1 : index
    %c0_23 = arith.constant 0 : index
    %c0_24 = arith.constant 0 : index
    %33 = vector.load %arg6[%c1_22, %c0_23, %c0_24] : memref<2x32x256xf32, #tpu.memory_space<vmem>>, vector<1x32x256xf32>
    %34 = vector.shape_cast %33 : vector<1x32x256xf32> to vector<32x256xf32>
    %35 = vector.shape_cast %32 : vector<32x256xf32> to vector<1x32x256xf32>
    tpu.vector_store %arg6[%c1_22, %c0_23, %c0_24], %35 {strides = array<i32>} : memref<2x32x256xf32, #tpu.memory_space<vmem>>, vector<1x32x256xf32>,
    return
  }
  func.func @transform_0(%arg0: i32) -> (i32, i32, i32) {
    %c0_i32 = arith.constant 0 : i32
    %c0_i32_0 = arith.constant 0 : i32
    %c0_i32_1 = arith.constant 0 : i32
    return %c0_i32, %c0_i32_0, %arg0 : i32, i32, i32
  }
  func.func @transform_1(%arg0: i32) -> (i32, i32) {
    %c0_i32 = arith.constant 0 : i32
    %c0_i32_0 = arith.constant 0 : i32
    %c0_i32_1 = arith.constant 0 : i32
    return %c0_i32, %c0_i32_0 : i32, i32
  }
  func.func @transform_2(%arg0: i32) -> (i32, i32) {
    %c0_i32 = arith.constant 0 : i32
    %c0_i32_0 = arith.constant 0 : i32
    %c0_i32_1 = arith.constant 0 : i32
    return %c0_i32, %c0_i32_0 : i32, i32
  }
  func.func @transform_3(%arg0: i32) -> (i32, i32) {
    %c0_i32 = arith.constant 0 : i32
    %c0_i32_0 = arith.constant 0 : i32
    %c0_i32_1 = arith.constant 0 : i32
    return %c0_i32, %c0_i32_0 : i32, i32
  }
  func.func @transform_4(%arg0: i32) -> (i32, i32) {
    %c0_i32 = arith.constant 0 : i32
    %c0_i32_0 = arith.constant 0 : i32
    %c0_i32_1 = arith.constant 0 : i32
    return %c0_i32, %c0_i32_0 : i32, i32
  }
  func.func @transform_5(%arg0: i32) -> (i32, i32, i32) {
    %c0_i32 = arith.constant 0 : i32
    %c0_i32_0 = arith.constant 0 : i32
    %c0_i32_1 = arith.constant 0 : i32
    return %c0_i32, %c0_i32_0, %arg0 : i32, i32, i32
  }
}

</mosaic_0001>

<llo_original>
// kernel: tpu_custom_call.1
$region0: #{tpu_custom_call.1}
  #allocation0 [shape = 'u32[]', space=smem, size = 0x4, offset = 0x4, fixed_abs, tag = 'smem constant byte address 0x4 - core index']
  #allocation1 [shape = 'u32[144,128]{1,0:T(1,128)}', space=vmem, size = 0x12000, scoped, tag = 'internal scratch']
  %s0 = inlined_call_operand.hbm [shape: f32[2,32,256], index: 0, kind: input, shape index: {}]
  %s1 = inlined_call_operand.vmem [shape: f32[16,32], index: 1, kind: input, shape index: {}]
  %s2 = inlined_call_operand.vmem [shape: f32[16,1], index: 2, kind: input, shape index: {}]
  %s3 = inlined_call_operand.vmem [shape: f32[32,16], index: 3, kind: input, shape index: {}]
  %s4 = inlined_call_operand.vmem [shape: f32[32,1], index: 4, kind: input, shape index: {}]
  %s5 = inlined_call_operand.hbm [shape: f32[2,32,256], index: 5, kind: output, shape index: {}]
  %s6 = sld [smem:[#allocation0]]
  $region34: #{tpu_custom_call.1} parent=0
    _
  %s8 = ssub.s32 1, %s6
  %s9 = scalar_select 0, %s8, %s6
  $region1: #{tpu_custom_call.1} parent=0
    #allocation2 [shape = 'u8[65536]{0}', space=vmem, size = 0x10000, scoped, tag = 'input window, operand 0, single buffered']
    #allocation3 [shape = 's32[1]{0}', space=sflag, size = 0x4, scoped, tag = 'scoped memory for tpu_custom_call.1']
    #allocation4 [shape = 's32[1]{0}', space=sflag, size = 0x4, scoped, tag = 'scoped memory for tpu_custom_call.1']
    #allocation5 [shape = 'u8[65536]{0}', space=vmem, size = 0x10000, scoped, tag = 'output window, operand 0, single buffered']
    %10 = vsyncpa [#allocation3], 0
    %11 = vsyncpa [#allocation4], 0
    // Predicated region
    $region2: #{tpu_custom_call.1} parent=1 // pred_check
      _
    $region3: #{tpu_custom_call.1} parent=1 // pred_check_branch
      %13 = sbr.rel (0) target = $region5
    $region4: #{tpu_custom_call.1} parent=1 // pred_region
      %s15 = ssub.s32 2048, 2048
      %16 = vsyncadd [#allocation3], %s15
      %s17 = sshll.u32 [#allocation2], 4
      %s18 = int_to_ptr.vmem [resolvable:$true] %s17
      %23 = dma.hbm_to_vmem [thread:$0]  %s0, 2048, %s18, [#allocation3], 256, 256, 16
    $region5: #{tpu_custom_call.1} parent=1 // pred_fallthru
      _
    // Predicated region
    $region6: #{tpu_custom_call.1} parent=1 // pred_check
      _
    $region7: #{tpu_custom_call.1} parent=1 // pred_check_branch
      %25 = sbr.rel (0) target = $region9
    $region8: #{tpu_custom_call.1} parent=1 // pred_region
      _
    $region9: #{tpu_custom_call.1} parent=1 // pred_fallthru
      _
    // Predicated region
    $region10: #{tpu_custom_call.1} parent=1 // pred_check
      _
    $region11: #{tpu_custom_call.1} parent=1 // pred_check_branch
      %27 = sbr.rel (0) target = $region13
    $region12: #{tpu_custom_call.1} parent=1 // pred_region
      _
    $region13: #{tpu_custom_call.1} parent=1 // pred_fallthru
      _
    // Predicated region
    $region14: #{tpu_custom_call.1} parent=1 // pred_check
      _
    $region15: #{tpu_custom_call.1} parent=1 // pred_check_branch
      %29 = sbr.rel (0) target = $region17
    $region16: #{tpu_custom_call.1} parent=1 // pred_region
      _
    $region17: #{tpu_custom_call.1} parent=1 // pred_fallthru
      _
    // Predicated region
    $region18: #{tpu_custom_call.1} parent=1 // pred_check
      _
    $region19: #{tpu_custom_call.1} parent=1 // pred_check_branch
      %31 = sbr.rel (0) target = $region21
    $region20: #{tpu_custom_call.1} parent=1 // pred_region
      _
    $region21: #{tpu_custom_call.1} parent=1 // pred_fallthru
      _
    // Predicated region
    $region22: #{tpu_custom_call.1} parent=1 // pred_check
      _
    $region23: #{tpu_custom_call.1} parent=1 // pred_check_branch
      %33 = sbr.rel (0) target = $region25
    $region24: #{tpu_custom_call.1} parent=1 // pred_region
      %34 = dma.done [#allocation3], 2048
    $region25: #{tpu_custom_call.1} parent=1 // pred_fallthru
      _
    %v35 = vld [vmem:[%s1] sm:$0xff]
    %v36 = vld [vmem:[%s1 + $0x8] sm:$0xff]
    %v37 = vld [vmem:[%s3] sm:$0xff]
    %v38 = vld [vmem:[%s3 + $0x8] sm:$0xff]
    %v39 = vld [vmem:[%s3 + $0x10] sm:$0xff]
    %v40 = vld [vmem:[%s3 + $0x18] sm:$0xff]
    %v41 = vld [vmem:[%s2] sm:$0xff]
    %v42 = vld [vmem:[%s2 + $0x8] sm:$0xff]
    %v43 = vld [vmem:[%s4] sm:$0xff]
    %v44 = vld [vmem:[%s4 + $0x8] sm:$0xff]
    %v45 = vld [vmem:[%s4 + $0x10] sm:$0xff]
    %v46 = vld [vmem:[%s4 + $0x18] sm:$0xff]
    %v47 = vld [vmem:[#allocation2] sm:$0xff]
    %v48 = vld [vmem:[#allocation2 + $0x8] sm:$0xff]
    %v49 = vld [vmem:[#allocation2 + $0x10] sm:$0xff]
    %v50 = vld [vmem:[#allocation2 + $0x18] sm:$0xff]
    %v51 = vld [vmem:[#allocation2 + $0x20] sm:$0xff]
    %v52 = vld [vmem:[#allocation2 + $0x28] sm:$0xff]
    %v53 = vld [vmem:[#allocation2 + $0x30] sm:$0xff]
    %v54 = vld [vmem:[#allocation2 + $0x38] sm:$0xff]
    %56 = vset.pattern.permute.xlu0 0
    %57 = vperm.xlu0 %56, %v41
    %v58 = vpop.permute.xlu0 %57
    %61 = vset.pattern.permute.xlu0 0
    %62 = vperm.xlu0 %61, %v42
    %v63 = vpop.permute.xlu0 %62
    %vm65 = vcmask 261120
    %v67 = vsel %vm65, %v35, 0
    %v70 = vsel %vm65, %v36, 0
    %72 = vmatprep.subr.mxu0 %v48
    %73 = vmatpush1.msra.mxu0 %v47
    %74 = vmatprep.subr.mxu0 %v50
    %75 = vmatpush1.msra.mxu0 %v49
    %76 = vmatprep.subr.mxu0 %v52
    %77 = vmatpush1.msra.mxu0 %v51
    %78 = vmatprep.subr.mxu0 %v54
    %79 = vmatpush1.msra.mxu0 %v53
    %80 = vmatprep.subr.mxu0 0.0
    %81 = vmatpush1.msra.mxu0 0.0
    %82 = vmatprep.subr.mxu0 0.0
    %83 = vmatpush1.msra.mxu0 0.0
    %84 = vmatprep.subr.mxu0 0.0
    %85 = vmatpush1.msra.mxu0 0.0
    %86 = vmatprep.subr.mxu0 0.0
    %87 = vmatpush1.msra.mxu0 0.0
    %88 = vmatprep.subr.mxu0 0.0
    %89 = vmatpush1.msra.mxu0 0.0
    %90 = vmatprep.subr.mxu0 0.0
    %91 = vmatpush1.msra.mxu0 0.0
    %92 = vmatprep.subr.mxu0 0.0
    %93 = vmatpush1.msra.mxu0 0.0
    %94 = vmatprep.subr.mxu0 0.0
    %95 = vmatpush1.msra.mxu0 0.0
    %96 = vmatprep.subr.mxu0 0.0
    %97 = vmatpush1.msra.mxu0 0.0
    %98 = vmatprep.subr.mxu0 0.0
    %99 = vmatpush1.msra.mxu0 0.0
    %100 = vmatprep.subr.mxu0 0.0
    %101 = vmatpush1.msra.mxu0 0.0
    %102 = vmatprep.subr.mxu0 0.0
    %103 = vmatpush1.msra.mxu0 0.0
    %104 = vmatprep.subr.mxu0 0.0
    %105 = vmatpush1.msra.mxu0 0.0
    %106 = vmatprep.subr.mxu0 0.0
    %107 = vmatpush1.msra.mxu0 0.0
    %108 = vmatprep.subr.mxu0 0.0
    %109 = vmatpush1.msra.mxu0 0.0
    %110 = vmatprep.subr.mxu0 0.0
    %111 = vmatpush1.msra.mxu0 0.0
    %112 = vmatprep.subr.mxu0 0.0
    %113 = vmatpush1.msra.mxu0 0.0
    %114 = vmatprep.subr.mxu0 0.0
    %115 = vmatpush1.msra.mxu0 0.0
    %116 = vmatprep.subr.mxu0 0.0
    %117 = vmatpush1.msra.mxu0 0.0
    %118 = vmatprep.subr.mxu0 0.0
    %119 = vmatpush1.msra.mxu0 0.0
    %120 = vmatprep.subr.mxu0 0.0
    %121 = vmatpush1.msra.mxu0 0.0
    %122 = vmatprep.subr.mxu0 0.0
    %123 = vmatpush1.msra.mxu0 0.0
    %124 = vmatprep.subr.mxu0 0.0
    %125 = vmatpush1.msra.mxu0 0.0
    %126 = vmatprep.subr.mxu0 0.0
    %127 = vmatpush1.msra.mxu0 0.0
    %128 = vmatprep.subr.mxu0 0.0
    %129 = vmatpush1.msra.mxu0 0.0
    %130 = vmatprep.subr.mxu0 0.0
    %131 = vmatpush1.msra.mxu0 0.0
    %132 = vmatprep.subr.mxu0 0.0
    %133 = vmatpush1.msra.mxu0 0.0
    %134 = vmatprep.subr.mxu0 0.0
    %135 = vmatpush1.msra.mxu0 0.0
    %136 = vmatprep.mubr.f32.mxu0 0.0
    %137 = vmatmul.mubr.f32.gmra.mrb[0].mxu0 %v67
    %v138 = vpop.f32.mrb[0].mxu0
    %v139 = vadd.f32 %v58, %v138
    %v140 = vpop.f32.mrb[0].mxu0
    %v141 = vadd.f32 %v58, %v140
    %142 = vmatprep.mubr.f32.mxu0 0.0
    %143 = vmatmul.mubr.f32.gmra.mrb[0].mxu0 %v70
    %v144 = vpop.f32.mrb[0].mxu0
    %v145 = vadd.f32 %v63, %v144
    %v146 = vpop.f32.mrb[0].mxu0
    %v147 = vadd.f32 %v63, %v146
    %148 = vdwg.mxu0
    %v149 = vmax.f32 %v139, 0.0
    %v150 = vmax.f32 %v141, 0.0
    %v151 = vmax.f32 %v145, 0.0
    %v152 = vmax.f32 %v147, 0.0
    %154 = vset.pattern.permute.xlu0 0
    %155 = vperm.xlu0 %154, %v43
    %v156 = vpop.permute.xlu0 %155
    %159 = vset.pattern.permute.xlu0 0
    %160 = vperm.xlu0 %159, %v44
    %v161 = vpop.permute.xlu0 %160
    %164 = vset.pattern.permute.xlu0 0
    %165 = vperm.xlu0 %164, %v45
    %v166 = vpop.permute.xlu0 %165
    %169 = vset.pattern.permute.xlu0 0
    %170 = vperm.xlu0 %169, %v46
    %v171 = vpop.permute.xlu0 %170
    %vm173 = vcmask 130048
    %v175 = vsel %vm173, %v37, 0
    %v178 = vsel %vm173, %v38, 0
    %v181 = vsel %vm173, %v39, 0
    %v184 = vsel %vm173, %v40, 0
    %186 = vmatprep.subr.mxu0 %v150
    %187 = vmatpush1.msra.mxu0 %v149
    %188 = vmatprep.subr.mxu0 %v152
    %189 = vmatpush1.msra.mxu0 %v151
    %190 = vmatprep.subr.mxu0 0.0
    %191 = vmatpush1.msra.mxu0 0.0
    %192 = vmatprep.subr.mxu0 0.0
    %193 = vmatpush1.msra.mxu0 0.0
    %194 = vmatprep.subr.mxu0 0.0
    %195 = vmatpush1.msra.mxu0 0.0
    %196 = vmatprep.subr.mxu0 0.0
    %197 = vmatpush1.msra.mxu0 0.0
    %198 = vmatprep.subr.mxu0 0.0
    %199 = vmatpush1.msra.mxu0 0.0
    %200 = vmatprep.subr.mxu0 0.0
    %201 = vmatpush1.msra.mxu0 0.0
    %202 = vmatprep.subr.mxu0 0.0
    %203 = vmatpush1.msra.mxu0 0.0
    %204 = vmatprep.subr.mxu0 0.0
    %205 = vmatpush1.msra.mxu0 0.0
    %206 = vmatprep.subr.mxu0 0.0
    %207 = vmatpush1.msra.mxu0 0.0
    %208 = vmatprep.subr.mxu0 0.0
    %209 = vmatpush1.msra.mxu0 0.0
    %210 = vmatprep.subr.mxu0 0.0
    %211 = vmatpush1.msra.mxu0 0.0
    %212 = vmatprep.subr.mxu0 0.0
    %213 = vmatpush1.msra.mxu0 0.0
    %214 = vmatprep.subr.mxu0 0.0
    %215 = vmatpush1.msra.mxu0 0.0
    %216 = vmatprep.subr.mxu0 0.0
    %217 = vmatpush1.msra.mxu0 0.0
    %218 = vmatprep.subr.mxu0 0.0
    %219 = vmatpush1.msra.mxu0 0.0
    %220 = vmatprep.subr.mxu0 0.0
    %221 = vmatpush1.msra.mxu0 0.0
    %222 = vmatprep.subr.mxu0 0.0
    %223 = vmatpush1.msra.mxu0 0.0
    %224 = vmatprep.subr.mxu0 0.0
    %225 = vmatpush1.msra.mxu0 0.0
    %226 = vmatprep.subr.mxu0 0.0
    %227 = vmatpush1.msra.mxu0 0.0
    %228 = vmatprep.subr.mxu0 0.0
    %229 = vmatpush1.msra.mxu0 0.0
    %230 = vmatprep.subr.mxu0 0.0
    %231 = vmatpush1.msra.mxu0 0.0
    %232 = vmatprep.subr.mxu0 0.0
    %233 = vmatpush1.msra.mxu0 0.0
    %234 = vmatprep.subr.mxu0 0.0
    %235 = vmatpush1.msra.mxu0 0.0
    %236 = vmatprep.subr.mxu0 0.0
    %237 = vmatpush1.msra.mxu0 0.0
    %238 = vmatprep.subr.mxu0 0.0
    %239 = vmatpush1.msra.mxu0 0.0
    %240 = vmatprep.subr.mxu0 0.0
    %241 = vmatpush1.msra.mxu0 0.0
    %242 = vmatprep.subr.mxu0 0.0
    %243 = vmatpush1.msra.mxu0 0.0
    %244 = vmatprep.subr.mxu0 0.0
    %245 = vmatpush1.msra.mxu0 0.0
    %246 = vmatprep.subr.mxu0 0.0
    %247 = vmatpush1.msra.mxu0 0.0
    %248 = vmatprep.subr.mxu0 0.0
    %249 = vmatpush1.msra.mxu0 0.0
    %250 = vmatprep.mubr.f32.mxu0 0.0
    %251 = vmatmul.mubr.f32.gmra.mrb[0].mxu0 %v175
    %v252 = vpop.f32.mrb[0].mxu0
    %v253 = vadd.f32 %v156, %v252
    %v254 = vpop.f32.mrb[0].mxu0
    %v255 = vadd.f32 %v156, %v254
    %256 = vmatprep.mubr.f32.mxu0 0.0
    %257 = vmatmul.mubr.f32.gmra.mrb[0].mxu0 %v178
    %v258 = vpop.f32.mrb[0].mxu0
    %v259 = vadd.f32 %v161, %v258
    %v260 = vpop.f32.mrb[0].mxu0
    %v261 = vadd.f32 %v161, %v260
    %262 = vmatprep.mubr.f32.mxu0 0.0
    %263 = vmatmul.mubr.f32.gmra.mrb[0].mxu0 %v181
    %v264 = vpop.f32.mrb[0].mxu0
    %v265 = vadd.f32 %v166, %v264
    %v266 = vpop.f32.mrb[0].mxu0
    %v267 = vadd.f32 %v166, %v266
    %268 = vmatprep.mubr.f32.mxu0 0.0
    %269 = vmatmul.mubr.f32.gmra.mrb[0].mxu0 %v184
    %v270 = vpop.f32.mrb[0].mxu0
    %v271 = vadd.f32 %v171, %v270
    %v272 = vpop.f32.mrb[0].mxu0
    %v273 = vadd.f32 %v171, %v272
    %274 = vdwg.mxu0
    %v275 = vadd.f32 %v253, %v47
    %v276 = vadd.f32 %v255, %v48
    %v277 = vadd.f32 %v259, %v49
    %v278 = vadd.f32 %v261, %v50
    %v279 = vadd.f32 %v265, %v51
    %v280 = vadd.f32 %v267, %v52
    %v281 = vadd.f32 %v271, %v53
    %v282 = vadd.f32 %v273, %v54
    %v283 = vmax.f32 %v275, 0.0
    %v284 = vmax.f32 %v276, 0.0
    %v285 = vmax.f32 %v277, 0.0
    %v286 = vmax.f32 %v278, 0.0
    %v287 = vmax.f32 %v279, 0.0
    %v288 = vmax.f32 %v280, 0.0
    %v289 = vmax.f32 %v281, 0.0
    %v290 = vmax.f32 %v282, 0.0
    %291 = vst [vmem:[#allocation5] sm:$0xff] %v283
    %292 = vst [vmem:[#allocation5 + $0x8] sm:$0xff] %v284
    %293 = vst [vmem:[#allocation5 + $0x10] sm:$0xff] %v285
    %294 = vst [vmem:[#allocation5 + $0x18] sm:$0xff] %v286
    %295 = vst [vmem:[#allocation5 + $0x20] sm:$0xff] %v287
    %296 = vst [vmem:[#allocation5 + $0x28] sm:$0xff] %v288
    %297 = vst [vmem:[#allocation5 + $0x30] sm:$0xff] %v289
    %298 = vst [vmem:[#allocation5 + $0x38] sm:$0xff] %v290
    %s299 = scalar_lea.vmem [#allocation2], 64
    %v300 = vld [vmem:[%s299] sm:$0xff]
    %v301 = vld [vmem:[%s299 + $0x8] sm:$0xff]
    %v302 = vld [vmem:[%s299 + $0x10] sm:$0xff]
    %v303 = vld [vmem:[%s299 + $0x18] sm:$0xff]
    %v304 = vld [vmem:[%s299 + $0x20] sm:$0xff]
    %v305 = vld [vmem:[%s299 + $0x28] sm:$0xff]
    %v306 = vld [vmem:[%s299 + $0x30] sm:$0xff]
    %v307 = vld [vmem:[%s299 + $0x38] sm:$0xff]
    %308 = vmatprep.subr.mxu0 %v301
    %309 = vmatpush1.msra.mxu0 %v300
    %310 = vmatprep.subr.mxu0 %v303
    %311 = vmatpush1.msra.mxu0 %v302
    %312 = vmatprep.subr.mxu0 %v305
    %313 = vmatpush1.msra.mxu0 %v304
    %314 = vmatprep.subr.mxu0 %v307
    %315 = vmatpush1.msra.mxu0 %v306
    %316 = vmatprep.subr.mxu0 0.0
    %317 = vmatpush1.msra.mxu0 0.0
    %318 = vmatprep.subr.mxu0 0.0
    %319 = vmatpush1.msra.mxu0 0.0
    %320 = vmatprep.subr.mxu0 0.0
    %321 = vmatpush1.msra.mxu0 0.0
    %322 = vmatprep.subr.mxu0 0.0
    %323 = vmatpush1.msra.mxu0 0.0
    %324 = vmatprep.subr.mxu0 0.0
    %325 = vmatpush1.msra.mxu0 0.0
    %326 = vmatprep.subr.mxu0 0.0
    %327 = vmatpush1.msra.mxu0 0.0
    %328 = vmatprep.subr.mxu0 0.0
    %329 = vmatpush1.msra.mxu0 0.0
    %330 = vmatprep.subr.mxu0 0.0
    %331 = vmatpush1.msra.mxu0 0.0
    %332 = vmatprep.subr.mxu0 0.0
    %333 = vmatpush1.msra.mxu0 0.0
    %334 = vmatprep.subr.mxu0 0.0
    %335 = vmatpush1.msra.mxu0 0.0
    %336 = vmatprep.subr.mxu0 0.0
    %337 = vmatpush1.msra.mxu0 0.0
    %338 = vmatprep.subr.mxu0 0.0
    %339 = vmatpush1.msra.mxu0 0.0
    %340 = vmatprep.subr.mxu0 0.0
    %341 = vmatpush1.msra.mxu0 0.0
    %342 = vmatprep.subr.mxu0 0.0
    %343 = vmatpush1.msra.mxu0 0.0
    %344 = vmatprep.subr.mxu0 0.0
    %345 = vmatpush1.msra.mxu0 0.0
    %346 = vmatprep.subr.mxu0 0.0
    %347 = vmatpush1.msra.mxu0 0.0
    %348 = vmatprep.subr.mxu0 0.0
    %349 = vmatpush1.msra.mxu0 0.0
    %350 = vmatprep.subr.mxu0 0.0
    %351 = vmatpush1.msra.mxu0 0.0
    %352 = vmatprep.subr.mxu0 0.0
    %353 = vmatpush1.msra.mxu0 0.0
    %354 = vmatprep.subr.mxu0 0.0
    %355 = vmatpush1.msra.mxu0 0.0
    %356 = vmatprep.subr.mxu0 0.0
    %357 = vmatpush1.msra.mxu0 0.0
    %358 = vmatprep.subr.mxu0 0.0
    %359 = vmatpush1.msra.mxu0 0.0
    %360 = vmatprep.subr.mxu0 0.0
    %361 = vmatpush1.msra.mxu0 0.0
    %362 = vmatprep.subr.mxu0 0.0
    %363 = vmatpush1.msra.mxu0 0.0
    %364 = vmatprep.subr.mxu0 0.0
    %365 = vmatpush1.msra.mxu0 0.0
    %366 = vmatprep.subr.mxu0 0.0
    %367 = vmatpush1.msra.mxu0 0.0
    %368 = vmatprep.subr.mxu0 0.0
    %369 = vmatpush1.msra.mxu0 0.0
    %370 = vmatprep.subr.mxu0 0.0
    %371 = vmatpush1.msra.mxu0 0.0
    %372 = vmatprep.mubr.f32.mxu0 0.0
    %373 = vmatmul.mubr.f32.gmra.mrb[0].mxu0 %v67
    %v374 = vpop.f32.mrb[0].mxu0
    %v375 = vadd.f32 %v58, %v374
    %v376 = vpop.f32.mrb[0].mxu0
    %v377 = vadd.f32 %v58, %v376
    %378 = vmatprep.mubr.f32.mxu0 0.0
    %379 = vmatmul.mubr.f32.gmra.mrb[0].mxu0 %v70
    %v380 = vpop.f32.mrb[0].mxu0
    %v381 = vadd.f32 %v63, %v380
    %v382 = vpop.f32.mrb[0].mxu0
    %v383 = vadd.f32 %v63, %v382
    %384 = vdwg.mxu0
    %v385 = vmax.f32 %v375, 0.0
    %v386 = vmax.f32 %v377, 0.0
    %v387 = vmax.f32 %v381, 0.0
    %v388 = vmax.f32 %v383, 0.0
    %389 = vmatprep.subr.mxu0 %v386
    %390 = vmatpush1.msra.mxu0 %v385
    %391 = vmatprep.subr.mxu0 %v388
    %392 = vmatpush1.msra.mxu0 %v387
    %393 = vmatprep.subr.mxu0 0.0
    %394 = vmatpush1.msra.mxu0 0.0
    %395 = vmatprep.subr.mxu0 0.0
    %396 = vmatpush1.msra.mxu0 0.0
    %397 = vmatprep.subr.mxu0 0.0
    %398 = vmatpush1.msra.mxu0 0.0
    %399 = vmatprep.subr.mxu0 0.0
    %400 = vmatpush1.msra.mxu0 0.0
    %401 = vmatprep.subr.mxu0 0.0
    %402 = vmatpush1.msra.mxu0 0.0
    %403 = vmatprep.subr.mxu0 0.0
    %404 = vmatpush1.msra.mxu0 0.0
    %405 = vmatprep.subr.mxu0 0.0
    %406 = vmatpush1.msra.mxu0 0.0
    %407 = vmatprep.subr.mxu0 0.0
    %408 = vmatpush1.msra.mxu0 0.0
    %409 = vmatprep.subr.mxu0 0.0
    %410 = vmatpush1.msra.mxu0 0.0
    %411 = vmatprep.subr.mxu0 0.0
    %412 = vmatpush1.msra.mxu0 0.0
    %413 = vmatprep.subr.mxu0 0.0
    %414 = vmatpush1.msra.mxu0 0.0
    %415 = vmatprep.subr.mxu0 0.0
    %416 = vmatpush1.msra.mxu0 0.0
    %417 = vmatprep.subr.mxu0 0.0
    %418 = vmatpush1.msra.mxu0 0.0
    %419 = vmatprep.subr.mxu0 0.0
    %420 = vmatpush1.msra.mxu0 0.0
    %421 = vmatprep.subr.mxu0 0.0
    %422 = vmatpush1.msra.mxu0 0.0
    %423 = vmatprep.subr.mxu0 0.0
    %424 = vmatpush1.msra.mxu0 0.0
    %425 = vmatprep.subr.mxu0 0.0
    %426 = vmatpush1.msra.mxu0 0.0
    %427 = vmatprep.subr.mxu0 0.0
    %428 = vmatpush1.msra.mxu0 0.0
    %429 = vmatprep.subr.mxu0 0.0
    %430 = vmatpush1.msra.mxu0 0.0
    %431 = vmatprep.subr.mxu0 0.0
    %432 = vmatpush1.msra.mxu0 0.0
    %433 = vmatprep.subr.mxu0 0.0
    %434 = vmatpush1.msra.mxu0 0.0
    %435 = vmatprep.subr.mxu0 0.0
    %436 = vmatpush1.msra.mxu0 0.0
    %437 = vmatprep.subr.mxu0 0.0
    %438 = vmatpush1.msra.mxu0 0.0
    %439 = vmatprep.subr.mxu0 0.0
    %440 = vmatpush1.msra.mxu0 0.0
    %441 = vmatprep.subr.mxu0 0.0
    %442 = vmatpush1.msra.mxu0 0.0
    %443 = vmatprep.subr.mxu0 0.0
    %444 = vmatpush1.msra.mxu0 0.0
    %445 = vmatprep.subr.mxu0 0.0
    %446 = vmatpush1.msra.mxu0 0.0
    %447 = vmatprep.subr.mxu0 0.0
    %448 = vmatpush1.msra.mxu0 0.0
    %449 = vmatprep.subr.mxu0 0.0
    %450 = vmatpush1.msra.mxu0 0.0
    %451 = vmatprep.subr.mxu0 0.0
    %452 = vmatpush1.msra.mxu0 0.0
    %453 = vmatprep.mubr.f32.mxu0 0.0
    %454 = vmatmul.mubr.f32.gmra.mrb[0].mxu0 %v175
    %v455 = vpop.f32.mrb[0].mxu0
    %v456 = vadd.f32 %v156, %v455
    %v457 = vpop.f32.mrb[0].mxu0
    %v458 = vadd.f32 %v156, %v457
    %459 = vmatprep.mubr.f32.mxu0 0.0
    %460 = vmatmul.mubr.f32.gmra.mrb[0].mxu0 %v178
    %v461 = vpop.f32.mrb[0].mxu0
    %v462 = vadd.f32 %v161, %v461
    %v463 = vpop.f32.mrb[0].mxu0
    %v464 = vadd.f32 %v161, %v463
    %465 = vmatprep.mubr.f32.mxu0 0.0
    %466 = vmatmul.mubr.f32.gmra.mrb[0].mxu0 %v181
    %v467 = vpop.f32.mrb[0].mxu0
    %v468 = vadd.f32 %v166, %v467
    %v469 = vpop.f32.mrb[0].mxu0
    %v470 = vadd.f32 %v166, %v469
    %471 = vmatprep.mubr.f32.mxu0 0.0
    %472 = vmatmul.mubr.f32.gmra.mrb[0].mxu0 %v184
    %v473 = vpop.f32.mrb[0].mxu0
    %v474 = vadd.f32 %v171, %v473
    %v475 = vpop.f32.mrb[0].mxu0
    %v476 = vadd.f32 %v171, %v475
    %477 = vdwg.mxu0
    %v478 = vadd.f32 %v456, %v300
    %v479 = vadd.f32 %v458, %v301
    %v480 = vadd.f32 %v462, %v302
    %v481 = vadd.f32 %v464, %v303
    %v482 = vadd.f32 %v468, %v304
    %v483 = vadd.f32 %v470, %v305
    %v484 = vadd.f32 %v474, %v306
    %v485 = vadd.f32 %v476, %v307
    %v486 = vmax.f32 %v478, 0.0
    %v487 = vmax.f32 %v479, 0.0
    %v488 = vmax.f32 %v480, 0.0
    %v489 = vmax.f32 %v481, 0.0
    %v490 = vmax.f32 %v482, 0.0
    %v491 = vmax.f32 %v483, 0.0
    %v492 = vmax.f32 %v484, 0.0
    %v493 = vmax.f32 %v485, 0.0
    %s494 = scalar_lea.vmem [#allocation5], 64
    %495 = vst [vmem:[%s494] sm:$0xff] %v486
    %496 = vst [vmem:[%s494 + $0x8] sm:$0xff] %v487
    %497 = vst [vmem:[%s494 + $0x10] sm:$0xff] %v488
    %498 = vst [vmem:[%s494 + $0x18] sm:$0xff] %v489
    %499 = vst [vmem:[%s494 + $0x20] sm:$0xff] %v490
    %500 = vst [vmem:[%s494 + $0x28] sm:$0xff] %v491
    %501 = vst [vmem:[%s494 + $0x30] sm:$0xff] %v492
    %502 = vst [vmem:[%s494 + $0x38] sm:$0xff] %v493
    // Predicated region
    $region26: #{tpu_custom_call.1} parent=1 // pred_check
      _
    $region27: #{tpu_custom_call.1} parent=1 // pred_check_branch
      %504 = sbr.rel (0) target = $region29
    $region28: #{tpu_custom_call.1} parent=1 // pred_region
      %s506 = ssub.s32 2048, 2048
      %507 = vsyncadd [#allocation4], %s506
      %s508 = sshll.u32 [#allocation5], 4
      %s509 = int_to_ptr.vmem [resolvable:$true] %s508
      %514 = dma.vmem_to_hbm [thread:$0]  %s509, 2048, %s5, [#allocation4], 256, 256, 16
    $region29: #{tpu_custom_call.1} parent=1 // pred_fallthru
      _
    // Predicated region
    $region30: #{tpu_custom_call.1} parent=1 // pred_check
      _
    $region31: #{tpu_custom_call.1} parent=1 // pred_check_branch
      %516 = sbr.rel (0) target = $region33
    $region32: #{tpu_custom_call.1} parent=1 // pred_region
      %517 = dma.done [#allocation4], 2048
    $region33: #{tpu_custom_call.1} parent=1 // pred_fallthru
      _
    %518 = vsyncpa [#allocation3], 1
    %519 = vsyncpa [#allocation4], 1

</llo_original>
